<compile_context>
chip_gen: v5e
topology: v5e:2x2
jax: 0.10.0
libtpu: 0.0.40
codegen_flags: <defaults>
</compile_context>

<pallas_src>
import functools

import jax
import jax.numpy as jnp
from jax import lax
from jax.experimental import pallas as pl
from jax.experimental.pallas import tpu as pltpu


def _vq_kernel(x_ref, e_dist_ref, e_gath_ref, e2_ref, q_ref, onehot_ref, *, fold, n_embed_pad):
    # x_ref:      (tile_r, fold*dim)  in x.dtype -- `fold` original rows packed per folded row
    # e_dist_ref: (fold*P, fold*dim)  bf16 (or f32) block-diagonal codebook for distances
    # e_gath_ref: (fold*P, fold*dim)  gather-dtype block-diagonal codebook for the one-hot gather
    # e2_ref:     (1, fold*P)         f32, 0.5*||e_c||^2 per segment, +inf on padded codes
    # q_ref:      (tile_r, fold*dim)  output in x.dtype (lane-dense last dim)
    # onehot_ref: (tile_r, fold*P)    VMEM scratch holding the per-segment one-hots
    x = x_ref[...].astype(e_dist_ref.dtype)          # cast on load (free vs DMA), bf16 matmul

    # scores[r, k*P + c] = 0.5*||e_c||^2 - <x_{fold*r+k}, e_c>
    # (per-row ||x||^2 dropped and everything scaled by 0.5: argmin-equivalent to cdist)
    xe = lax.dot_general(x, e_dist_ref[...],
                         dimension_numbers=(((1,), (1,)), ((), ())),
                         preferred_element_type=jnp.float32)          # (tile_r, fold*P) -> MXU
    scores = e2_ref[...] - xe

    rows = scores.shape[0]
    iota = lax.broadcasted_iota(jnp.int32, (rows, n_embed_pad), 1)    # hoisted out of fold loop

    # Per 128-wide segment: first-argmin (matches torch .min(1)) -> one-hot into scratch.
    for k in range(fold):                                             # static, unrolled
        seg = scores[:, k * n_embed_pad:(k + 1) * n_embed_pad]        # 128-aligned lane slice
        idx = jnp.argmin(seg, axis=-1)
        onehot_ref[:, k * n_embed_pad:(k + 1) * n_embed_pad] = (
            (iota == idx[:, None]).astype(onehot_ref.dtype))

    # Gather = one-hot matmul against the block-diagonal codebook (MXU, no dynamic gather).
    q_ref[...] = lax.dot_general(onehot_ref[...], e_gath_ref[...],
                                 dimension_numbers=(((1,), (0,)), ((), ())),
                                 preferred_element_type=jnp.float32).astype(q_ref.dtype)


def quantizer_forward(x, embed, *, distance_dtype=jnp.bfloat16,
                      max_tile_rows=None, vmem_budget_bytes=None):
    """x: (..., dim) float, embed: (dim, n_embed) float -> quantize with shape/dtype of x."""
    dim, n_embed = embed.shape
    orig_shape = x.shape
    out_dtype = x.dtype
    flat = x.reshape(-1, dim)                                   # native dtype; no f32 upcast
    n = flat.shape[0]

    # --- lane-dense layout choices --------------------------------------------------------
    n_embed_pad = 128 * pl.cdiv(n_embed, 128)                   # codebook cols padded to lanes
    fold = (128 // dim) if (dim < 128 and 128 % dim == 0) else 1  # rows packed per folded row
    # block-diagonal codebook scales as fold^2 * P * dim; cap its footprint (v7x VMEM concern)
    if fold > 1 and fold * fold * n_embed_pad * dim * 4 > (4 << 20):
        fold = 1

    pad_rows = (-n) % fold                                      # at most fold-1 rows; usually 0
    if pad_rows:
        flat = jnp.concatenate([flat, jnp.zeros((pad_rows, dim), flat.dtype)], axis=0)
    n_rows = n + pad_rows
    n_folded = n_rows // fold
    fold_dim = fold * dim
    x_folded = flat.reshape(n_folded, fold_dim)                 # contiguous reshape (free)

    gather_dtype = jnp.float32 if out_dtype == jnp.float32 else jnp.bfloat16

    # --- loop-invariant codebook tensors (hoisted; VMEM-resident via constant index_map) ---
    embed_t = embed.astype(jnp.float32).T                       # (n_embed, dim)
    embed_t_pad = jnp.zeros((n_embed_pad, dim), jnp.float32).at[:n_embed, :].set(embed_t)
    e2_half = 0.5 * jnp.sum(embed_t_pad * embed_t_pad, axis=-1)            # pre-scaled by 0.5
    e2_half = jnp.where(jnp.arange(n_embed_pad) < n_embed, e2_half, jnp.inf)  # pads never win
    if fold == 1:
        e_big = embed_t_pad                                     # (P, dim)
        e2_big = e2_half.reshape(1, n_embed_pad)
    else:
        # block-diagonal: segment k of a folded row sees its own copy of the codebook
        e_big = jnp.kron(jnp.eye(fold, dtype=jnp.float32), embed_t_pad)    # (fold*P, fold*dim)
        e2_big = jnp.tile(e2_half, fold).reshape(1, fold * n_embed_pad)
    e_dist = e_big.astype(distance_dtype)                       # bf16 distance operand
    e_gath = e_big.astype(gather_dtype)                         # exact gather operand

    # --- generation-aware VMEM / tile budget ------------------------------------------------
    try:
        vmem_cap = pltpu.get_tpu_info().vmem_capacity_bytes
    except Exception:
        vmem_cap = 64 * 1024 * 1024
    if vmem_cap >= 100 * 1024 * 1024:        # v5e / v6e: 128 MiB physical VMEM
        default_budget, default_max_rows, vmem_limit = 20 << 20, 2048, 64 << 20
    else:                                    # v7x: 64 MiB physical
        default_budget, default_max_rows, vmem_limit = 8 << 20, 1024, 32 << 20
    if vmem_budget_bytes is None:
        vmem_budget_bytes = default_budget
    if max_tile_rows is None:
        max_tile_rows = default_max_rows

    fp = fold * n_embed_pad
    in_b = jnp.dtype(flat.dtype).itemsize
    out_b = jnp.dtype(out_dtype).itemsize
    dist_b = jnp.dtype(distance_dtype).itemsize
    gath_b = jnp.dtype(gather_dtype).itemsize
    per_row_bytes = (2 * in_b * fold_dim        # double-buffered input block
                     + 2 * out_b * fold_dim     # double-buffered output block
                     + dist_b * fold_dim        # in-kernel bf16 cast of x
                     + 4 * fp                   # xe
                     + 4 * fp                   # scores
                     + 4 * fp                   # iota + compare temps
                     + gath_b * fp              # one-hot scratch
                     + 4 * fp)                  # argmin / broadcast temps
    const_bytes = 2 * ((dist_b + gath_b) * int(e_big.size) + 4 * fp)  # resident codebook blocks
    avail = max(vmem_budget_bytes - const_bytes, 1 << 20)
    tile_r = min(max_tile_rows, max(8, avail // per_row_bytes))
    tile_r = max(8, (tile_r // 8) * 8)
    if n_folded > 8:
        # keep >= 2 grid steps so both v7x TensorCores get work under "parallel" semantics
        half = 8 * pl.cdiv(pl.cdiv(n_folded, 2), 8)
        tile_r = min(tile_r, max(8, half))
    tile_r = min(tile_r, 8 * pl.cdiv(n_folded, 8))              # don't exceed data
    grid = (pl.cdiv(n_folded, tile_r),)                         # ragged last block: OOB writes dropped

    kernel = functools.partial(_vq_kernel, fold=fold, n_embed_pad=n_embed_pad)

    out = pl.pallas_call(
        kernel,
        out_shape=jax.ShapeDtypeStruct((n_folded, fold_dim), out_dtype),
        grid_spec=pltpu.PrefetchScalarGridSpec(
            num_scalar_prefetch=0,
            grid=grid,
            in_specs=[
                pl.BlockSpec((tile_r, fold_dim), lambda i: (i, 0)),
                pl.BlockSpec(e_dist.shape, lambda i: (0, 0)),   # resident bf16 codebook
                pl.BlockSpec(e_gath.shape, lambda i: (0, 0)),   # resident gather codebook
                pl.BlockSpec(e2_big.shape, lambda i: (0, 0)),   # resident 0.5*||e||^2
            ],
            out_specs=pl.BlockSpec((tile_r, fold_dim), lambda i: (i, 0)),
            scratch_shapes=[pltpu.VMEM((tile_r, fold * n_embed_pad), gather_dtype)],
        ),
        compiler_params=pltpu.CompilerParams(
            dimension_semantics=("parallel",),
            vmem_limit_bytes=vmem_limit,
        ),
    )(x_folded, e_dist, e_gath, e2_big)

    out = out.reshape(n_rows, dim)
    if pad_rows:
        out = out[:n]
    return out.reshape(orig_shape)


def quantizer_forward_ref(x, embed):
    """Pure-JAX reference mirroring the PyTorch module."""
    dim, n_embed = embed.shape
    flat = x.reshape(-1, dim).astype(jnp.float32)
    d = (jnp.sum(flat * flat, -1, keepdims=True)
         - 2.0 * flat @ embed
         + jnp.sum(embed * embed, 0)[None, :])
    idx = jnp.argmin(d, axis=-1)
    return embed.T[idx].reshape(x.shape)


if __name__ == "__main__":
    key = jax.random.PRNGKey(0)
    k_embed, k_x = jax.random.split(key)

    dim = 32
    n_embed = 64
    # input: (B, H, W, dim) channels-last, last axis is the embedding dim
    x = jax.random.normal(k_x, (2, 8, 8, dim), dtype=jnp.float32)
    embed = jax.random.normal(k_embed, (dim, n_embed), dtype=jnp.float32)

    # ---- fast path (default: bf16 distance matmul) -------------------------------------
    q = jax.block_until_ready(quantizer_forward(x, embed))
    assert q.shape == x.shape and q.dtype == x.dtype
    # Robust VQ check: every output row is a codebook column, and the selected code is
    # (near-)nearest.  bf16 scoring may legitimately flip argmin on near-ties, so compare
    # distances rather than requiring bit-identical indices.
    flat = x.reshape(-1, dim).astype(jnp.float32)
    qf = q.reshape(-1, dim).astype(jnp.float32)
    et = embed.T.astype(jnp.float32)                            # (n_embed, dim)
    code_err = jnp.min(jnp.sum((qf[:, None, :] - et[None, :, :]) ** 2, -1), -1)
    assert bool(jnp.all(code_err <= 1e-5)), "output row is not a codebook entry"
    d_all = jnp.sum((flat[:, None, :] - et[None, :, :]) ** 2, -1)
    d_min = jnp.min(d_all, -1)
    d_sel = jnp.sum((flat - qf) ** 2, -1)
    assert bool(jnp.all(d_sel <= d_min * 1.05 + 1.0)), "selected code is not nearest"

    # ---- bit-parity path (f32 distance matmul) must match the pure-JAX reference --------
    q_exact = jax.block_until_ready(quantizer_forward(x, embed, distance_dtype=jnp.float32))
    q_ref = quantizer_forward_ref(x, embed)
    assert jnp.allclose(q_exact, q_ref, atol=1e-4, rtol=1e-4), "mismatch vs reference"

    print("KERNEL_OK")
</pallas_src>

<mosaic_0001>
module attributes {stable_mosaic.version = 11 : i64} {
  func.func @_vq_kernel(%arg0: i32, %arg1: memref<16x128xf32, #tpu.memory_space<vmem>>, %arg2: memref<512x128xbf16, #tpu.memory_space<vmem>>, %arg3: memref<512x128xf32, #tpu.memory_space<vmem>>, %arg4: memref<1x512xf32, #tpu.memory_space<vmem>>, %arg5: memref<16x128xf32, #tpu.memory_space<vmem>>, %arg6: memref<16x512xf32, #tpu.memory_space<vmem>>) attributes {dimension_semantics = [#tpu.dimension_semantics<parallel>], iteration_bounds = array<i64: 2>, scalar_prefetch = 0 : i64, scratch_operands = 1 : i64, tpu.core_type = #tpu.core_type<tc>, window_params = [{transform_indices = @transform_0, window_bounds = array<i64: 16, 128>}, {pipeline_mode = #tpu.pipeline_mode<synchronous>, transform_indices = @transform_1, window_bounds = array<i64: 512, 128>}, {pipeline_mode = #tpu.pipeline_mode<synchronous>, transform_indices = @transform_2, window_bounds = array<i64: 512, 128>}, {pipeline_mode = #tpu.pipeline_mode<synchronous>, transform_indices = @transform_3, window_bounds = array<i64: 1, 512>}, {transform_indices = @transform_4, window_bounds = array<i64: 16, 128>}]} {
    %c0 = arith.constant 0 : index
    %c0_0 = arith.constant 0 : index
    %0 = vector.load %arg1[%c0, %c0_0] : memref<16x128xf32, #tpu.memory_space<vmem>>, vector<16x128xf32>
    %1 = arith.truncf %0 : vector<16x128xf32> to vector<16x128xbf16>
    %c0_1 = arith.constant 0 : index
    %c0_2 = arith.constant 0 : index
    %2 = vector.load %arg2[%c0_1, %c0_2] : memref<512x128xbf16, #tpu.memory_space<vmem>>, vector<512x128xbf16>
    %cst = arith.constant dense<0.000000e+00> : vector<16x512xf32>
    %3 = tpu.matmul %1, %2, %cst {dimension_numbers = #tpu.dot_dimension_numbers<[1], [1], [0], [0], [0, 0, 1, 0], [], []>} : vector<16x128xbf16>, vector<512x128xbf16>, vector<16x512xf32> -> vector<16x512xf32>
    %c0_3 = arith.constant 0 : index
    %c0_4 = arith.constant 0 : index
    %4 = vector.load %arg4[%c0_3, %c0_4] : memref<1x512xf32, #tpu.memory_space<vmem>>, vector<1x512xf32>
    %5 = vector.broadcast %4 : vector<1x512xf32> to vector<16x512xf32>
    %6 = arith.subf %5, %3 : vector<16x512xf32>
    %7 = tpu.iota {dimensions = array<i32: 1>} : vector<16x128xi32>
    %8 = vector.extract_strided_slice %6 {offsets = [0, 0], sizes = [16, 128], strides = [1, 1]} : vector<16x512xf32> to vector<16x128xf32>
    %9 = tpu.reduce_index %8 {axis = 1 : i32, kind = #tpu.reduction_kind<arg_min>} : vector<16x128xf32> -> vector<16xi32>
    %10 = vector.shape_cast %9 : vector<16xi32> to vector<16x1xi32>
    %11 = vector.broadcast %10 : vector<16x1xi32> to vector<16x128xi32>
    %12 = arith.cmpi eq, %7, %11 : vector<16x128xi32>
    %13 = arith.extui %12 : vector<16x128xi1> to vector<16x128xi32>
    %14 = arith.sitofp %13 : vector<16x128xi32> to vector<16x128xf32>
    %c0_5 = arith.constant 0 : index
    %c0_6 = arith.constant 0 : index
    %15 = vector.load %arg6[%c0_5, %c0_6] : memref<16x512xf32, #tpu.memory_space<vmem>>, vector<16x128xf32>
    tpu.vector_store %arg6[%c0_5, %c0_6], %14 {strides = array<i32>} : memref<16x512xf32, #tpu.memory_space<vmem>>, vector<16x128xf32>,
    %16 = vector.extract_strided_slice %6 {offsets = [0, 128], sizes = [16, 128], strides = [1, 1]} : vector<16x512xf32> to vector<16x128xf32>
    %17 = tpu.reduce_index %16 {axis = 1 : i32, kind = #tpu.reduction_kind<arg_min>} : vector<16x128xf32> -> vector<16xi32>
    %18 = vector.shape_cast %17 : vector<16xi32> to vector<16x1xi32>
    %19 = vector.broadcast %18 : vector<16x1xi32> to vector<16x128xi32>
    %20 = arith.cmpi eq, %7, %19 : vector<16x128xi32>
    %21 = arith.extui %20 : vector<16x128xi1> to vector<16x128xi32>
    %22 = arith.sitofp %21 : vector<16x128xi32> to vector<16x128xf32>
    %c0_7 = arith.constant 0 : index
    %c128 = arith.constant 128 : index
    %23 = vector.load %arg6[%c0_7, %c128] : memref<16x512xf32, #tpu.memory_space<vmem>>, vector<16x128xf32>
    tpu.vector_store %arg6[%c0_7, %c128], %22 {strides = array<i32>} : memref<16x512xf32, #tpu.memory_space<vmem>>, vector<16x128xf32>,
    %24 = vector.extract_strided_slice %6 {offsets = [0, 256], sizes = [16, 128], strides = [1, 1]} : vector<16x512xf32> to vector<16x128xf32>
    %25 = tpu.reduce_index %24 {axis = 1 : i32, kind = #tpu.reduction_kind<arg_min>} : vector<16x128xf32> -> vector<16xi32>
    %26 = vector.shape_cast %25 : vector<16xi32> to vector<16x1xi32>
    %27 = vector.broadcast %26 : vector<16x1xi32> to vector<16x128xi32>
    %28 = arith.cmpi eq, %7, %27 : vector<16x128xi32>
    %29 = arith.extui %28 : vector<16x128xi1> to vector<16x128xi32>
    %30 = arith.sitofp %29 : vector<16x128xi32> to vector<16x128xf32>
    %c0_8 = arith.constant 0 : index
    %c256 = arith.constant 256 : index
    %31 = vector.load %arg6[%c0_8, %c256] : memref<16x512xf32, #tpu.memory_space<vmem>>, vector<16x128xf32>
    tpu.vector_store %arg6[%c0_8, %c256], %30 {strides = array<i32>} : memref<16x512xf32, #tpu.memory_space<vmem>>, vector<16x128xf32>,
    %32 = vector.extract_strided_slice %6 {offsets = [0, 384], sizes = [16, 128], strides = [1, 1]} : vector<16x512xf32> to vector<16x128xf32>
    %33 = tpu.reduce_index %32 {axis = 1 : i32, kind = #tpu.reduction_kind<arg_min>} : vector<16x128xf32> -> vector<16xi32>
    %34 = vector.shape_cast %33 : vector<16xi32> to vector<16x1xi32>
    %35 = vector.broadcast %34 : vector<16x1xi32> to vector<16x128xi32>
    %36 = arith.cmpi eq, %7, %35 : vector<16x128xi32>
    %37 = arith.extui %36 : vector<16x128xi1> to vector<16x128xi32>
    %38 = arith.sitofp %37 : vector<16x128xi32> to vector<16x128xf32>
    %c0_9 = arith.constant 0 : index
    %c384 = arith.constant 384 : index
    %39 = vector.load %arg6[%c0_9, %c384] : memref<16x512xf32, #tpu.memory_space<vmem>>, vector<16x128xf32>
    tpu.vector_store %arg6[%c0_9, %c384], %38 {strides = array<i32>} : memref<16x512xf32, #tpu.memory_space<vmem>>, vector<16x128xf32>,
    %c0_10 = arith.constant 0 : index
    %c0_11 = arith.constant 0 : index
    %40 = vector.load %arg6[%c0_10, %c0_11] : memref<16x512xf32, #tpu.memory_space<vmem>>, vector<16x512xf32>
    %c0_12 = arith.constant 0 : index
    %c0_13 = arith.constant 0 : index
    %41 = vector.load %arg3[%c0_12, %c0_13] : memref<512x128xf32, #tpu.memory_space<vmem>>, vector<512x128xf32>
    %cst_14 = arith.constant dense<0.000000e+00> : vector<16x128xf32>
    %42 = tpu.matmul %40, %41, %cst_14 {dimension_numbers = #tpu.dot_dimension_numbers<[1], [0], [0], [1], [0, 0, 1, 1], [], []>} : vector<16x512xf32>, vector<512x128xf32>, vector<16x128xf32> -> vector<16x128xf32>
    %c0_15 = arith.constant 0 : index
    %c0_16 = arith.constant 0 : index
    %43 = vector.load %arg5[%c0_15, %c0_16] : memref<16x128xf32, #tpu.memory_space<vmem>>, vector<16x128xf32>
    tpu.vector_store %arg5[%c0_15, %c0_16], %42 {strides = array<i32>} : memref<16x128xf32, #tpu.memory_space<vmem>>, vector<16x128xf32>,
    return
  }
  func.func @transform_0(%arg0: i32) -> (i32, i32) {
    %c0_i32 = arith.constant 0 : i32
    %c0_i32_0 = arith.constant 0 : i32
    return %arg0, %c0_i32 : i32, i32
  }
  func.func @transform_1(%arg0: i32) -> (i32, i32) {
    %c0_i32 = arith.constant 0 : i32
    %c0_i32_0 = arith.constant 0 : i32
    %c0_i32_1 = arith.constant 0 : i32
    return %c0_i32, %c0_i32_0 : i32, i32
  }
  func.func @transform_2(%arg0: i32) -> (i32, i32) {
    %c0_i32 = arith.constant 0 : i32
    %c0_i32_0 = arith.constant 0 : i32
    %c0_i32_1 = arith.constant 0 : i32
    return %c0_i32, %c0_i32_0 : i32, i32
  }
  func.func @transform_3(%arg0: i32) -> (i32, i32) {
    %c0_i32 = arith.constant 0 : i32
    %c0_i32_0 = arith.constant 0 : i32
    %c0_i32_1 = arith.constant 0 : i32
    return %c0_i32, %c0_i32_0 : i32, i32
  }
  func.func @transform_4(%arg0: i32) -> (i32, i32) {
    %c0_i32 = arith.constant 0 : i32
    %c0_i32_0 = arith.constant 0 : i32
    return %arg0, %c0_i32 : i32, i32
  }
}

</mosaic_0001>

<llo_original>
// kernel: tpu_custom_call.1
$region0: #{tpu_custom_call.1}
  #allocation0 [shape = 'u32[]', space=smem, size = 0x4, offset = 0x4, fixed_abs, tag = 'smem constant byte address 0x4 - core index']
  #allocation1 [shape = 'u32[72,128]{1,0:T(1,128)}', space=vmem, size = 0x9000, scoped, tag = 'internal scratch']
  #allocation2 [shape = 'f32[16,512]{1,0:T(8,128)}', space=vmem, size = 0x8000, scoped, tag = 'scratch operand']
  %s0 = inlined_call_operand.hbm [shape: f32[32,128], index: 0, kind: input, shape index: {}]
  %s1 = inlined_call_operand.hbm [shape: bf16[512,128], index: 1, kind: input, shape index: {}]
  %s2 = inlined_call_operand.hbm [shape: f32[512,128], index: 2, kind: input, shape index: {}]
  %s3 = inlined_call_operand.hbm [shape: f32[1,512], index: 3, kind: input, shape index: {}]
  %s4 = inlined_call_operand.hbm [shape: f32[32,128], index: 4, kind: output, shape index: {}]
  %s5 = sld [smem:[#allocation0]]
  $region65: #{tpu_custom_call.1} parent=0
    _
  %s7 = ssub.s32 1, %s5
  %s8 = scalar_select 0, %s7, %s5
  $region1: #{tpu_custom_call.1} parent=0
    #allocation3 [shape = 'u8[16384]{0}', space=vmem, size = 0x4000, scoped, tag = 'input window, operand 0']
    #allocation4 [shape = 's32[2]{0}', space=sflag, size = 0x8, scoped, tag = 'scoped memory for tpu_custom_call.1']
    #allocation5 [shape = 's32[2]{0}', space=sflag, size = 0x8, scoped, tag = 'scoped memory for tpu_custom_call.1']
    #allocation6 [shape = 'u8[131072]{0}', space=vmem, size = 0x20000, scoped, tag = 'input window, operand 1, single buffered']
    #allocation7 [shape = 's32[1]{0}', space=sflag, size = 0x4, scoped, tag = 'scoped memory for tpu_custom_call.1']
    #allocation8 [shape = 'u8[262144]{0}', space=vmem, size = 0x40000, scoped, tag = 'input window, operand 2, single buffered']
    #allocation9 [shape = 'u8[2048]{0}', space=vmem, size = 0x800, scoped, tag = 'input window, operand 3, single buffered']
    #allocation10 [shape = 's32[1]{0}', space=sflag, size = 0x4, scoped, tag = 'scoped memory for tpu_custom_call.1']
    #allocation11 [shape = 'u8[16384]{0}', space=vmem, size = 0x4000, scoped, tag = 'output window, operand 0']
    %9 = vsyncpa [#allocation4], 0
    %s10 = scalar_lea.sflag [#allocation4], 1
    %11 = vsyncpa %s10, 0
    %12 = vsyncpa [#allocation7], 0
    %13 = vsyncpa [#allocation10], 0
    %14 = vsyncpa [#allocation5], 0
    %s15 = scalar_lea.sflag [#allocation5], 1
    %16 = vsyncpa %s15, 0
    loop: start=0, step=1, limit=4
    $region2: #{tpu_custom_call.1} parent=1 // loop_pre_header
      _
    $region3: #{tpu_custom_call.1} parent=1 // loop_header
      %s18 = sphi 0, %s22
      %p19 = scmp.ge.s32.totalorder %s18, 4
      %s28 = sphi 0, %s30
      %s31 = sphi 0, %s28
      %s32 = sphi 0, %s31
      %s48 = sphi 0, %s32
      %s52 = sphi 0, %s52
      %s54 = sphi 0, %s52
      %s55 = sphi 0, %s54
      %s69 = sphi 0, %s55
      %s73 = sphi 0, %s73
      %s75 = sphi 0, %s73
      %s76 = sphi 0, %s75
      %s90 = sphi 0, %s76
      %s94 = sphi 0, %s94
      %s96 = sphi 0, %s94
      %s97 = sphi 0, %s96
      %s111 = sphi 0, %s97
      %s117 = sphi 0, %s119
      %s120 = sphi 0, %s117
      %s121 = sphi 0, %s120
      %s137 = sphi 0, %s121
    $region4: #{tpu_custom_call.1} parent=1 // loop_header_branch
      %21 = sbr.rel (%p19) target = $region8
    $region5: #{tpu_custom_call.1} parent=1 // loop_body
      %s23 = ssub.s32 %s18, 1
      %s24 = ssub.s32 %s18, 2
      %s25 = sadd.s32 %s18, 1
      %s26 = ssub.s32 %s18, %s25
      %p27 = scmp.eq.s32.totalorder %s26, 0
      %s29 = sadd.s32 %s28, 1
      %s30 = scalar_select %p27, %s28, %s29
      %p33 = pneg %p27
      %p34 = scmp.eq.s32.totalorder %s18, 1
      %p35 = por %p33, %p34
      %p36 = scmp.ne.s32.totalorder %s28, %s31
      %p37 = scmp.eq.s32.totalorder %s18, 0
      %p38 = por %p36, %p37
      %p39 = scmp.ne.s32.totalorder %s28, %s31
      %p40 = scmp.eq.s32.totalorder %s23, 1
      %p41 = por %p39, %p40
      %p42 = scmp.ne.s32.totalorder %s31, %s32
      %p43 = scmp.eq.s32.totalorder %s23, 0
      %p44 = por %p42, %p43
      %p45 = scmp.ne.s32.totalorder %s31, %s32
      %p46 = scmp.eq.s32.totalorder %s24, 1
      %p47 = por %p45, %p46
      %p49 = scmp.ne.s32.totalorder %s32, %s48
      %p50 = scmp.eq.s32.totalorder %s24, 0
      %p51 = por %p49, %p50
      %s53 = sadd.s32 %s52, 1
      %p56 = scmp.eq.s32.totalorder %s18, 1
      %p57 = scmp.ne.s32.totalorder %s52, %s54
      %p58 = scmp.eq.s32.totalorder %s18, 0
      %p59 = por %p57, %p58
      %p60 = scmp.ne.s32.totalorder %s52, %s54
      %p61 = scmp.eq.s32.totalorder %s23, 1
      %p62 = por %p60, %p61
      %p63 = scmp.ne.s32.totalorder %s54, %s55
      %p64 = scmp.eq.s32.totalorder %s23, 0
      %p65 = por %p63, %p64
      %p66 = scmp.ne.s32.totalorder %s54, %s55
      %p67 = scmp.eq.s32.totalorder %s24, 1
      %p68 = por %p66, %p67
      %p70 = scmp.ne.s32.totalorder %s55, %s69
      %p71 = scmp.eq.s32.totalorder %s24, 0
      %p72 = por %p70, %p71
      %s74 = sadd.s32 %s73, 1
      %p77 = scmp.eq.s32.totalorder %s18, 1
      %p78 = scmp.ne.s32.totalorder %s73, %s75
      %p79 = scmp.eq.s32.totalorder %s18, 0
      %p80 = por %p78, %p79
      %p81 = scmp.ne.s32.totalorder %s73, %s75
      %p82 = scmp.eq.s32.totalorder %s23, 1
      %p83 = por %p81, %p82
      %p84 = scmp.ne.s32.totalorder %s75, %s76
      %p85 = scmp.eq.s32.totalorder %s23, 0
      %p86 = por %p84, %p85
      %p87 = scmp.ne.s32.totalorder %s75, %s76
      %p88 = scmp.eq.s32.totalorder %s24, 1
      %p89 = por %p87, %p88
      %p91 = scmp.ne.s32.totalorder %s76, %s90
      %p92 = scmp.eq.s32.totalorder %s24, 0
      %p93 = por %p91, %p92
      %s95 = sadd.s32 %s94, 1
      %p98 = scmp.eq.s32.totalorder %s18, 1
      %p99 = scmp.ne.s32.totalorder %s94, %s96
      %p100 = scmp.eq.s32.totalorder %s18, 0
      %p101 = por %p99, %p100
      %p102 = scmp.ne.s32.totalorder %s94, %s96
      %p103 = scmp.eq.s32.totalorder %s23, 1
      %p104 = por %p102, %p103
      %p105 = scmp.ne.s32.totalorder %s96, %s97
      %p106 = scmp.eq.s32.totalorder %s23, 0
      %p107 = por %p105, %p106
      %p108 = scmp.ne.s32.totalorder %s96, %s97
      %p109 = scmp.eq.s32.totalorder %s24, 1
      %p110 = por %p108, %p109
      %p112 = scmp.ne.s32.totalorder %s97, %s111
      %p113 = scmp.eq.s32.totalorder %s24, 0
      %p114 = por %p112, %p113
      %s115 = ssub.s32 %s18, %s25
      %p116 = scmp.eq.s32.totalorder %s115, 0
      %s118 = sadd.s32 %s117, 1
      %s119 = scalar_select %p116, %s117, %s118
      %p122 = pneg %p116
      %p123 = scmp.eq.s32.totalorder %s18, 1
      %p124 = por %p122, %p123
      %p125 = scmp.ne.s32.totalorder %s117, %s120
      %p126 = scmp.eq.s32.totalorder %s18, 0
      %p127 = por %p125, %p126
      %p128 = scmp.ne.s32.totalorder %s117, %s120
      %p129 = scmp.eq.s32.totalorder %s23, 1
      %p130 = por %p128, %p129
      %p131 = scmp.ne.s32.totalorder %s120, %s121
      %p132 = scmp.eq.s32.totalorder %s23, 0
      %p133 = por %p131, %p132
      %p134 = scmp.ne.s32.totalorder %s120, %s121
      %p135 = scmp.eq.s32.totalorder %s24, 1
      %p136 = por %p134, %p135
      %p138 = scmp.ne.s32.totalorder %s121, %s137
      %p139 = scmp.eq.s32.totalorder %s24, 0
      %p140 = por %p138, %p139
      %p141 = scmp.le.s32.totalorder 1, %s18
      %p142 = scmp.lt.s32.totalorder %s18, 3
      %p143 = pnand %p141, %p142
      %p144 = pneg %p143
      // Predicated region
      $region9: #{tpu_custom_call.1} parent=5 // pred_check
        _
      $region10: #{tpu_custom_call.1} parent=5 // pred_check_branch
        %146 = sbr.rel (%p143) target = $region12
      $region11: #{tpu_custom_call.1} parent=5 // pred_region
        %s147 = ssub.s32 %s18, 1
        // Predicated region
        $region13: #{tpu_custom_call.1} parent=11 // pred_check
          %p148 = pneg %p65
        $region14: #{tpu_custom_call.1} parent=11 // pred_check_branch
          %150 = sbr.rel (%p148) target = $region16
        $region15: #{tpu_custom_call.1} parent=11 // pred_region
          %152 = vsyncadd [#allocation7], 0
          %s153 = sshll.u32 %s1, 4
          %s154 = int_to_ptr.hbm [resolvable:$true] %s153
          %s155 = sshll.u32 [#allocation6], 4
          %s156 = int_to_ptr.vmem [resolvable:$true] %s155
          %161 = dma.hbm_to_vmem [thread:$0]  %s154, 4096, %s156, [#allocation7], 64, 64, 4
        $region16: #{tpu_custom_call.1} parent=11 // pred_fallthru
          _
        // Predicated region
        $region17: #{tpu_custom_call.1} parent=11 // pred_check
          %p162 = pneg %p86
        $region18: #{tpu_custom_call.1} parent=11 // pred_check_branch
          %164 = sbr.rel (%p162) target = $region20
        $region19: #{tpu_custom_call.1} parent=11 // pred_region
          %166 = vsyncadd [#allocation7], 0
          %s167 = sshll.u32 %s2, 4
          %s168 = int_to_ptr.hbm [resolvable:$true] %s167
          %s169 = sshll.u32 [#allocation8], 4
          %s170 = int_to_ptr.vmem [resolvable:$true] %s169
          %175 = dma.hbm_to_vmem [thread:$0]  %s168, 8192, %s170, [#allocation7], 128, 128, 8
        $region20: #{tpu_custom_call.1} parent=11 // pred_fallthru
          _
        // Predicated region
        $region21: #{tpu_custom_call.1} parent=11 // pred_check
          %p176 = pneg %p107
        $region22: #{tpu_custom_call.1} parent=11 // pred_check_branch
          %178 = sbr.rel (%p176) target = $region24
        $region23: #{tpu_custom_call.1} parent=11 // pred_region
          %180 = vsyncadd [#allocation10], 0
          %s182 = sshll.u32 %s3, 4
          %s183 = int_to_ptr.hbm [resolvable:$true] %s182
          %s184 = sshll.u32 [#allocation9], 4
          %s185 = int_to_ptr.vmem [resolvable:$true] %s184
          %187 = dma.hbm_to_vmem [thread:$0]  %s183, 64, %s185, [#allocation10]
        $region24: #{tpu_custom_call.1} parent=11 // pred_fallthru
          _
      $region12: #{tpu_custom_call.1} parent=5 // pred_fallthru
        _
      %p188 = scmp.lt.s32.totalorder %s18, 2
      // Predicated region
      $region25: #{tpu_custom_call.1} parent=5 // pred_check
        %p189 = pneg %p188
      $region26: #{tpu_custom_call.1} parent=5 // pred_check_branch
        %191 = sbr.rel (%p189) target = $region28
      $region27: #{tpu_custom_call.1} parent=5 // pred_region
        // Predicated region
        $region29: #{tpu_custom_call.1} parent=27 // pred_check
          %p192 = pneg %p38
        $region30: #{tpu_custom_call.1} parent=27 // pred_check_branch
          %194 = sbr.rel (%p192) target = $region32
        $region31: #{tpu_custom_call.1} parent=27 // pred_region
          %s195 = sand.u32 %s28, 1
          %s196 = scalar_lea.sflag [#allocation4], %s195
          %s197 = sand.u32 %s28, 1
          %s198 = smul.addr %s197, 16
          %s199 = scalar_lea.vmem [#allocation3], %s198
          %s200 = smul.u32 2, %s18
          %202 = vsyncadd %s196, 0
          %s203 = smul.addr %s200, 8
          %s204 = scalar_lea.hbm %s0, %s203
          %s205 = sshll.u32 %s204, 4
          %s206 = int_to_ptr.hbm [resolvable:$true] %s205
          %s207 = sshll.u32 %s199, 4
          %s208 = int_to_ptr.vmem [resolvable:$true] %s207
          %213 = dma.hbm_to_vmem [thread:$0]  %s206, 256, %s208, %s196, 128, 128, 8
        $region32: #{tpu_custom_call.1} parent=27 // pred_fallthru
          _
      $region28: #{tpu_custom_call.1} parent=5 // pred_fallthru
        _
      %p214 = scmp.le.s32.totalorder 1, %s18
      %p215 = scmp.lt.s32.totalorder %s18, 3
      %p216 = pnand %p214, %p215
      %p217 = pneg %p216
      // Predicated region
      $region33: #{tpu_custom_call.1} parent=5 // pred_check
        _
      $region34: #{tpu_custom_call.1} parent=5 // pred_check_branch
        %219 = sbr.rel (%p216) target = $region36
      $region35: #{tpu_custom_call.1} parent=5 // pred_region
        %s220 = ssub.s32 %s18, 1
        %s221 = sand.u32 %s31, 1
        %s222 = scalar_lea.sflag [#allocation4], %s221
        %s223 = sand.u32 %s31, 1
        %s224 = smul.addr %s223, 16
        %s225 = scalar_lea.vmem [#allocation3], %s224
        // Predicated region
        $region37: #{tpu_custom_call.1} parent=35 // pred_check
          %p226 = pneg %p44
        $region38: #{tpu_custom_call.1} parent=35 // pred_check_branch
          %228 = sbr.rel (%p226) target = $region40
        $region39: #{tpu_custom_call.1} parent=35 // pred_region
          %230 = dma.done %s222, 256
        $region40: #{tpu_custom_call.1} parent=35 // pred_fallthru
          _
        // Predicated region
        $region41: #{tpu_custom_call.1} parent=35 // pred_check
          %p231 = pneg %p65
        $region42: #{tpu_custom_call.1} parent=35 // pred_check_branch
          %233 = sbr.rel (%p231) target = $region44
        $region43: #{tpu_custom_call.1} parent=35 // pred_region
          %235 = dma.done [#allocation7], 4096
        $region44: #{tpu_custom_call.1} parent=35 // pred_fallthru
          _
        // Predicated region
        $region45: #{tpu_custom_call.1} parent=35 // pred_check
          %p236 = pneg %p86
        $region46: #{tpu_custom_call.1} parent=35 // pred_check_branch
          %238 = sbr.rel (%p236) target = $region48
        $region47: #{tpu_custom_call.1} parent=35 // pred_region
          %240 = dma.done [#allocation7], 8192
        $region48: #{tpu_custom_call.1} parent=35 // pred_fallthru
          _
        // Predicated region
        $region49: #{tpu_custom_call.1} parent=35 // pred_check
          %p241 = pneg %p107
        $region50: #{tpu_custom_call.1} parent=35 // pred_check_branch
          %243 = sbr.rel (%p241) target = $region52
        $region51: #{tpu_custom_call.1} parent=35 // pred_region
          %245 = dma.done [#allocation10], 64
        $region52: #{tpu_custom_call.1} parent=35 // pred_fallthru
          _
        %s246 = sand.u32 %s31, 1
        %s247 = scalar_lea.sflag [#allocation4], %s246
        %s248 = sand.u32 %s31, 1
        %s249 = smul.addr %s248, 16
        %s250 = scalar_lea.vmem [#allocation3], %s249
        %p251 = pneg %p44
        %p252 = pneg %p41
        %p253 = pneg %p65
        %p254 = pneg %p62
        %p255 = pneg %p86
        %p256 = pneg %p83
        %p257 = pneg %p107
        %p258 = pneg %p104
        %p259 = pneg %p133
        %p260 = pneg %p130
        %s261 = sand.u32 %s120, 1
        %s262 = scalar_lea.sflag [#allocation5], %s261
        %s263 = sand.u32 %s120, 1
        %s264 = smul.addr %s263, 16
        %s265 = scalar_lea.vmem [#allocation11], %s264
        %s266 = smul.u32 2, %s23
        %s267 = smul.u32 2, %s23
        %v268 = vld [vmem:[%s225] sm:$0xff]
        %v269 = vld [vmem:[%s225 + $0x8] sm:$0xff]
        %v270 = vpack.c.bf16 %v269, %v268
        %v271 = vld [vmem:[#allocation6] sm:$0xf]
        %v272 = vld [vmem:[#allocation6 + $0x4] sm:$0xf]
        %v273 = vld [vmem:[#allocation6 + $0x8] sm:$0xf]
        %v274 = vld [vmem:[#allocation6 + $0xc] sm:$0xf]
        %v275 = vld [vmem:[#allocation6 + $0x10] sm:$0xf]
        %v276 = vld [vmem:[#allocation6 + $0x14] sm:$0xf]
        %v277 = vld [vmem:[#allocation6 + $0x18] sm:$0xf]
        %v278 = vld [vmem:[#allocation6 + $0x1c] sm:$0xf]
        %v279 = vld [vmem:[#allocation6 + $0x20] sm:$0xf]
        %v280 = vld [vmem:[#allocation6 + $0x24] sm:$0xf]
        %v281 = vld [vmem:[#allocation6 + $0x28] sm:$0xf]
        %v282 = vld [vmem:[#allocation6 + $0x2c] sm:$0xf]
        %v283 = vld [vmem:[#allocation6 + $0x30] sm:$0xf]
        %v284 = vld [vmem:[#allocation6 + $0x34] sm:$0xf]
        %v285 = vld [vmem:[#allocation6 + $0x38] sm:$0xf]
        %v286 = vld [vmem:[#allocation6 + $0x3c] sm:$0xf]
        %v287 = vld [vmem:[#allocation6 + $0x40] sm:$0xf]
        %v288 = vld [vmem:[#allocation6 + $0x44] sm:$0xf]
        %v289 = vld [vmem:[#allocation6 + $0x48] sm:$0xf]
        %v290 = vld [vmem:[#allocation6 + $0x4c] sm:$0xf]
        %v291 = vld [vmem:[#allocation6 + $0x50] sm:$0xf]
        %v292 = vld [vmem:[#allocation6 + $0x54] sm:$0xf]
        %v293 = vld [vmem:[#allocation6 + $0x58] sm:$0xf]
        %v294 = vld [vmem:[#allocation6 + $0x5c] sm:$0xf]
        %v295 = vld [vmem:[#allocation6 + $0x60] sm:$0xf]
        %v296 = vld [vmem:[#allocation6 + $0x64] sm:$0xf]
        %v297 = vld [vmem:[#allocation6 + $0x68] sm:$0xf]
        %v298 = vld [vmem:[#allocation6 + $0x6c] sm:$0xf]
        %v299 = vld [vmem:[#allocation6 + $0x70] sm:$0xf]
        %v300 = vld [vmem:[#allocation6 + $0x74] sm:$0xf]
        %v301 = vld [vmem:[#allocation6 + $0x78] sm:$0xf]
        %v302 = vld [vmem:[#allocation6 + $0x7c] sm:$0xf]
        %v303 = vld [vmem:[#allocation6 + $0x80] sm:$0xf]
        %v304 = vld [vmem:[#allocation6 + $0x84] sm:$0xf]
        %v305 = vld [vmem:[#allocation6 + $0x88] sm:$0xf]
        %v306 = vld [vmem:[#allocation6 + $0x8c] sm:$0xf]
        %v307 = vld [vmem:[#allocation6 + $0x90] sm:$0xf]
        %v308 = vld [vmem:[#allocation6 + $0x94] sm:$0xf]
        %v309 = vld [vmem:[#allocation6 + $0x98] sm:$0xf]
        %v310 = vld [vmem:[#allocation6 + $0x9c] sm:$0xf]
        %v311 = vld [vmem:[#allocation6 + $0xa0] sm:$0xf]
        %v312 = vld [vmem:[#allocation6 + $0xa4] sm:$0xf]
        %v313 = vld [vmem:[#allocation6 + $0xa8] sm:$0xf]
        %v314 = vld [vmem:[#allocation6 + $0xac] sm:$0xf]
        %v315 = vld [vmem:[#allocation6 + $0xb0] sm:$0xf]
        %v316 = vld [vmem:[#allocation6 + $0xb4] sm:$0xf]
        %v317 = vld [vmem:[#allocation6 + $0xb8] sm:$0xf]
        %v318 = vld [vmem:[#allocation6 + $0xbc] sm:$0xf]
        %v319 = vld [vmem:[#allocation6 + $0xc0] sm:$0xf]
        %v320 = vld [vmem:[#allocation6 + $0xc4] sm:$0xf]
        %v321 = vld [vmem:[#allocation6 + $0xc8] sm:$0xf]
        %v322 = vld [vmem:[#allocation6 + $0xcc] sm:$0xf]
        %v323 = vld [vmem:[#allocation6 + $0xd0] sm:$0xf]
        %v324 = vld [vmem:[#allocation6 + $0xd4] sm:$0xf]
        %v325 = vld [vmem:[#allocation6 + $0xd8] sm:$0xf]
        %v326 = vld [vmem:[#allocation6 + $0xdc] sm:$0xf]
        %v327 = vld [vmem:[#allocation6 + $0xe0] sm:$0xf]
        %v328 = vld [vmem:[#allocation6 + $0xe4] sm:$0xf]
        %v329 = vld [vmem:[#allocation6 + $0xe8] sm:$0xf]
        %v330 = vld [vmem:[#allocation6 + $0xec] sm:$0xf]
        %v331 = vld [vmem:[#allocation6 + $0xf0] sm:$0xf]
        %v332 = vld [vmem:[#allocation6 + $0xf4] sm:$0xf]
        %v333 = vld [vmem:[#allocation6 + $0xf8] sm:$0xf]
        %v334 = vld [vmem:[#allocation6 + $0xfc] sm:$0xf]
        %v399 = vunpack.c.l.b16 %v271
        %v400 = vunpack.c.l.b16 %v272
        %v401 = vunpack.c.l.b16 %v273
        %v402 = vunpack.c.l.b16 %v274
        %v403 = vunpack.c.l.b16 %v275
        %v404 = vunpack.c.l.b16 %v276
        %v405 = vunpack.c.l.b16 %v277
        %v406 = vunpack.c.l.b16 %v278
        %v407 = vunpack.c.l.b16 %v279
        %v408 = vunpack.c.l.b16 %v280
        %v409 = vunpack.c.l.b16 %v281
        %v410 = vunpack.c.l.b16 %v282
        %v411 = vunpack.c.l.b16 %v283
        %v412 = vunpack.c.l.b16 %v284
        %v413 = vunpack.c.l.b16 %v285
        %v414 = vunpack.c.l.b16 %v286
        %v415 = vunpack.c.l.b16 %v287
        %v416 = vunpack.c.l.b16 %v288
        %v417 = vunpack.c.l.b16 %v289
        %v418 = vunpack.c.l.b16 %v290
        %v419 = vunpack.c.l.b16 %v291
        %v420 = vunpack.c.l.b16 %v292
        %v421 = vunpack.c.l.b16 %v293
        %v422 = vunpack.c.l.b16 %v294
        %v423 = vunpack.c.l.b16 %v295
        %v424 = vunpack.c.l.b16 %v296
        %v425 = vunpack.c.l.b16 %v297
        %v426 = vunpack.c.l.b16 %v298
        %v427 = vunpack.c.l.b16 %v299
        %v428 = vunpack.c.l.b16 %v300
        %v429 = vunpack.c.l.b16 %v301
        %v430 = vunpack.c.l.b16 %v302
        %v431 = vunpack.c.l.b16 %v303
        %v432 = vunpack.c.l.b16 %v304
        %v433 = vunpack.c.l.b16 %v305
        %v434 = vunpack.c.l.b16 %v306
        %v435 = vunpack.c.l.b16 %v307
        %v436 = vunpack.c.l.b16 %v308
        %v437 = vunpack.c.l.b16 %v309
        %v438 = vunpack.c.l.b16 %v310
        %v439 = vunpack.c.l.b16 %v311
        %v440 = vunpack.c.l.b16 %v312
        %v441 = vunpack.c.l.b16 %v313
        %v442 = vunpack.c.l.b16 %v314
        %v443 = vunpack.c.l.b16 %v315
        %v444 = vunpack.c.l.b16 %v316
        %v445 = vunpack.c.l.b16 %v317
        %v446 = vunpack.c.l.b16 %v318
        %v447 = vunpack.c.l.b16 %v319
        %v448 = vunpack.c.l.b16 %v320
        %v449 = vunpack.c.l.b16 %v321
        %v450 = vunpack.c.l.b16 %v322
        %v451 = vunpack.c.l.b16 %v323
        %v452 = vunpack.c.l.b16 %v324
        %v453 = vunpack.c.l.b16 %v325
        %v454 = vunpack.c.l.b16 %v326
        %v455 = vunpack.c.l.b16 %v327
        %v456 = vunpack.c.l.b16 %v328
        %v457 = vunpack.c.l.b16 %v329
        %v458 = vunpack.c.l.b16 %v330
        %v459 = vunpack.c.l.b16 %v331
        %v460 = vunpack.c.l.b16 %v332
        %v461 = vunpack.c.l.b16 %v333
        %v462 = vunpack.c.l.b16 %v334
        %v463 = vpack.c.b16 %v400, %v399
        %v464 = vpack.c.b16 %v402, %v401
        %v465 = vpack.c.b16 %v404, %v403
        %v466 = vpack.c.b16 %v406, %v405
        %v467 = vpack.c.b16 %v408, %v407
        %v468 = vpack.c.b16 %v410, %v409
        %v469 = vpack.c.b16 %v412, %v411
        %v470 = vpack.c.b16 %v414, %v413
        %v471 = vpack.c.b16 %v416, %v415
        %v472 = vpack.c.b16 %v418, %v417
        %v473 = vpack.c.b16 %v420, %v419
        %v474 = vpack.c.b16 %v422, %v421
        %v475 = vpack.c.b16 %v424, %v423
        %v476 = vpack.c.b16 %v426, %v425
        %v477 = vpack.c.b16 %v428, %v427
        %v478 = vpack.c.b16 %v430, %v429
        %v479 = vpack.c.b16 %v432, %v431
        %v480 = vpack.c.b16 %v434, %v433
        %v481 = vpack.c.b16 %v436, %v435
        %v482 = vpack.c.b16 %v438, %v437
        %v483 = vpack.c.b16 %v440, %v439
        %v484 = vpack.c.b16 %v442, %v441
        %v485 = vpack.c.b16 %v444, %v443
        %v486 = vpack.c.b16 %v446, %v445
        %v487 = vpack.c.b16 %v448, %v447
        %v488 = vpack.c.b16 %v450, %v449
        %v489 = vpack.c.b16 %v452, %v451
        %v490 = vpack.c.b16 %v454, %v453
        %v491 = vpack.c.b16 %v456, %v455
        %v492 = vpack.c.b16 %v458, %v457
        %v493 = vpack.c.b16 %v460, %v459
        %v494 = vpack.c.b16 %v462, %v461
        %527 = vmatpush.bf16.xpose.msra.mxu0 %v470
        %528 = vmatpush.bf16.xpose.msra.mxu0 %v469
        %529 = vmatpush.bf16.xpose.msra.mxu0 %v468
        %530 = vmatpush.bf16.xpose.msra.mxu0 %v467
        %531 = vmatpush.bf16.xpose.msra.mxu0 %v466
        %532 = vmatpush.bf16.xpose.msra.mxu0 %v465
        %533 = vmatpush.bf16.xpose.msra.mxu0 %v464
        %534 = vmatpush.bf16.xpose.msra.mxu0 %v463
        %535 = vmatmul.bf16.gmra.mxu0 %v270
        %v536 = vpop.f32.mrf.mxu0
        %v537 = vadd.f32 0.0, %v536
        %v538 = vpop.f32.mrf.mxu0
        %v539 = vadd.f32 0.0, %v538
        %540 = vdwg.mxu0
        %541 = vmatpush.bf16.xpose.msra.mxu0 %v478
        %542 = vmatpush.bf16.xpose.msra.mxu0 %v477
        %543 = vmatpush.bf16.xpose.msra.mxu0 %v476
        %544 = vmatpush.bf16.xpose.msra.mxu0 %v475
        %545 = vmatpush.bf16.xpose.msra.mxu0 %v474
        %546 = vmatpush.bf16.xpose.msra.mxu0 %v473
        %547 = vmatpush.bf16.xpose.msra.mxu0 %v472
        %548 = vmatpush.bf16.xpose.msra.mxu0 %v471
        %549 = vmatmul.bf16.gmra.mxu0 %v270
        %v550 = vpop.f32.mrf.mxu0
        %v551 = vadd.f32 0.0, %v550
        %v552 = vpop.f32.mrf.mxu0
        %v553 = vadd.f32 0.0, %v552
        %554 = vdwg.mxu0
        %555 = vmatpush.bf16.xpose.msra.mxu0 %v486
        %556 = vmatpush.bf16.xpose.msra.mxu0 %v485
        %557 = vmatpush.bf16.xpose.msra.mxu0 %v484
        %558 = vmatpush.bf16.xpose.msra.mxu0 %v483
        %559 = vmatpush.bf16.xpose.msra.mxu0 %v482
        %560 = vmatpush.bf16.xpose.msra.mxu0 %v481
        %561 = vmatpush.bf16.xpose.msra.mxu0 %v480
        %562 = vmatpush.bf16.xpose.msra.mxu0 %v479
        %563 = vmatmul.bf16.gmra.mxu0 %v270
        %v564 = vpop.f32.mrf.mxu0
        %v565 = vadd.f32 0.0, %v564
        %v566 = vpop.f32.mrf.mxu0
        %v567 = vadd.f32 0.0, %v566
        %568 = vdwg.mxu0
        %569 = vmatpush.bf16.xpose.msra.mxu0 %v494
        %570 = vmatpush.bf16.xpose.msra.mxu0 %v493
        %571 = vmatpush.bf16.xpose.msra.mxu0 %v492
        %572 = vmatpush.bf16.xpose.msra.mxu0 %v491
        %573 = vmatpush.bf16.xpose.msra.mxu0 %v490
        %574 = vmatpush.bf16.xpose.msra.mxu0 %v489
        %575 = vmatpush.bf16.xpose.msra.mxu0 %v488
        %576 = vmatpush.bf16.xpose.msra.mxu0 %v487
        %577 = vmatmul.bf16.gmra.mxu0 %v270
        %v578 = vpop.f32.mrf.mxu0
        %v579 = vadd.f32 0.0, %v578
        %v580 = vpop.f32.mrf.mxu0
        %v581 = vadd.f32 0.0, %v580
        %582 = vdwg.mxu0
        %v583 = vld [vmem:[#allocation9] sm:$0xf]
        %v585 = vperm.slane %v583, 0
        %v586 = vperm.slane %v583, 1
        %v587 = vperm.slane %v583, 2
        %v588 = vperm.slane %v583, 3
        %v593 = vsub.f32 %v585, %v537
        %v594 = vsub.f32 %v586, %v551
        %v595 = vsub.f32 %v587, %v565
        %v596 = vsub.f32 %v588, %v579
        %v597 = vsub.f32 %v585, %v539
        %v598 = vsub.f32 %v586, %v553
        %v599 = vsub.f32 %v587, %v567
        %v600 = vsub.f32 %v588, %v581
        %v601 = vlaneseq
        %v602 = vand.u32 %v601, 127
        %603 = vmin.index.xlane.f32.xlu0 %v593
        %v604 = vpop.xlane.xlu0 %603
        %605 = vmin.index.xlane.f32.xlu0 %v597
        %v606 = vpop.xlane.xlu0 %605
        %vm607 = vcmp.eq.s32.totalorder %v602, %v604
        %vm608 = vcmp.eq.s32.totalorder %v602, %v606
        %v609 = vsel %vm607, 1, 0
        %v610 = vsel %vm608, 1, 0
        %v611 = vcvt.s32.f32 %v609
        %v612 = vcvt.s32.f32 %v610
        %613 = vst [vmem:[#allocation2] sm:$0xff] %v611
        %614 = vst [vmem:[#allocation2 + $0x20] sm:$0xff] %v612
        %615 = vmin.index.xlane.f32.xlu0 %v594
        %v616 = vpop.xlane.xlu0 %615
        %617 = vmin.index.xlane.f32.xlu0 %v598
        %v618 = vpop.xlane.xlu0 %617
        %vm619 = vcmp.eq.s32.totalorder %v602, %v616
        %vm620 = vcmp.eq.s32.totalorder %v602, %v618
        %v621 = vsel %vm619, 1, 0
        %v622 = vsel %vm620, 1, 0
        %v623 = vcvt.s32.f32 %v621
        %v624 = vcvt.s32.f32 %v622
        %625 = vst [vmem:[#allocation2 + $0x8] sm:$0xff] %v623
        %626 = vst [vmem:[#allocation2 + $0x28] sm:$0xff] %v624
        %627 = vmin.index.xlane.f32.xlu0 %v595
        %v628 = vpop.xlane.xlu0 %627
        %629 = vmin.index.xlane.f32.xlu0 %v599
        %v630 = vpop.xlane.xlu0 %629
        %vm631 = vcmp.eq.s32.totalorder %v602, %v628
        %vm632 = vcmp.eq.s32.totalorder %v602, %v630
        %v633 = vsel %vm631, 1, 0
        %v634 = vsel %vm632, 1, 0
        %v635 = vcvt.s32.f32 %v633
        %v636 = vcvt.s32.f32 %v634
        %637 = vst [vmem:[#allocation2 + $0x10] sm:$0xff] %v635
        %638 = vst [vmem:[#allocation2 + $0x30] sm:$0xff] %v636
        %639 = vmin.index.xlane.f32.xlu0 %v596
        %v640 = vpop.xlane.xlu0 %639
        %641 = vmin.index.xlane.f32.xlu0 %v600
        %v642 = vpop.xlane.xlu0 %641
        %vm643 = vcmp.eq.s32.totalorder %v602, %v640
        %vm644 = vcmp.eq.s32.totalorder %v602, %v642
        %v645 = vsel %vm643, 1, 0
        %v646 = vsel %vm644, 1, 0
        %v647 = vcvt.s32.f32 %v645
        %v648 = vcvt.s32.f32 %v646
        %649 = vst [vmem:[#allocation2 + $0x18] sm:$0xff] %v647
        %650 = vst [vmem:[#allocation2 + $0x38] sm:$0xff] %v648
        %v651 = vld [vmem:[#allocation2] sm:$0xff]
        %v652 = vld [vmem:[#allocation2 + $0x8] sm:$0xff]
        %v653 = vld [vmem:[#allocation2 + $0x10] sm:$0xff]
        %v654 = vld [vmem:[#allocation2 + $0x18] sm:$0xff]
        %v655 = vld [vmem:[#allocation2 + $0x20] sm:$0xff]
        %v656 = vld [vmem:[#allocation2 + $0x28] sm:$0xff]
        %v657 = vld [vmem:[#allocation2 + $0x30] sm:$0xff]
        %v658 = vld [vmem:[#allocation2 + $0x38] sm:$0xff]
        %v659 = vld [vmem:[#allocation8] sm:$0xff]
        %v660 = vld [vmem:[#allocation8 + $0x8] sm:$0xff]
        %v661 = vld [vmem:[#allocation8 + $0x10] sm:$0xff]
        %v662 = vld [vmem:[#allocation8 + $0x18] sm:$0xff]
        %v663 = vld [vmem:[#allocation8 + $0x20] sm:$0xff]
        %v664 = vld [vmem:[#allocation8 + $0x28] sm:$0xff]
        %v665 = vld [vmem:[#allocation8 + $0x30] sm:$0xff]
        %v666 = vld [vmem:[#allocation8 + $0x38] sm:$0xff]
        %v667 = vld [vmem:[#allocation8 + $0x40] sm:$0xff]
        %v668 = vld [vmem:[#allocation8 + $0x48] sm:$0xff]
        %v669 = vld [vmem:[#allocation8 + $0x50] sm:$0xff]
        %v670 = vld [vmem:[#allocation8 + $0x58] sm:$0xff]
        %v671 = vld [vmem:[#allocation8 + $0x60] sm:$0xff]
        %v672 = vld [vmem:[#allocation8 + $0x68] sm:$0xff]
        %v673 = vld [vmem:[#allocation8 + $0x70] sm:$0xff]
        %v674 = vld [vmem:[#allocation8 + $0x78] sm:$0xff]
        %v675 = vld [vmem:[#allocation8 + $0x80] sm:$0xff]
        %v676 = vld [vmem:[#allocation8 + $0x88] sm:$0xff]
        %v677 = vld [vmem:[#allocation8 + $0x90] sm:$0xff]
        %v678 = vld [vmem:[#allocation8 + $0x98] sm:$0xff]
        %v679 = vld [vmem:[#allocation8 + $0xa0] sm:$0xff]
        %v680 = vld [vmem:[#allocation8 + $0xa8] sm:$0xff]
        %v681 = vld [vmem:[#allocation8 + $0xb0] sm:$0xff]
        %v682 = vld [vmem:[#allocation8 + $0xb8] sm:$0xff]
        %v683 = vld [vmem:[#allocation8 + $0xc0] sm:$0xff]
        %v684 = vld [vmem:[#allocation8 + $0xc8] sm:$0xff]
        %v685 = vld [vmem:[#allocation8 + $0xd0] sm:$0xff]
        %v686 = vld [vmem:[#allocation8 + $0xd8] sm:$0xff]
        %v687 = vld [vmem:[#allocation8 + $0xe0] sm:$0xff]
        %v688 = vld [vmem:[#allocation8 + $0xe8] sm:$0xff]
        %v689 = vld [vmem:[#allocation8 + $0xf0] sm:$0xff]
        %v690 = vld [vmem:[#allocation8 + $0xf8] sm:$0xff]
        %v691 = vld [vmem:[#allocation8 + $0x100] sm:$0xff]
        %v692 = vld [vmem:[#allocation8 + $0x108] sm:$0xff]
        %v693 = vld [vmem:[#allocation8 + $0x110] sm:$0xff]
        %v694 = vld [vmem:[#allocation8 + $0x118] sm:$0xff]
        %v695 = vld [vmem:[#allocation8 + $0x120] sm:$0xff]
        %v696 = vld [vmem:[#allocation8 + $0x128] sm:$0xff]
        %v697 = vld [vmem:[#allocation8 + $0x130] sm:$0xff]
        %v698 = vld [vmem:[#allocation8 + $0x138] sm:$0xff]
        %v699 = vld [vmem:[#allocation8 + $0x140] sm:$0xff]
        %v700 = vld [vmem:[#allocation8 + $0x148] sm:$0xff]
        %v701 = vld [vmem:[#allocation8 + $0x150] sm:$0xff]
        %v702 = vld [vmem:[#allocation8 + $0x158] sm:$0xff]
        %v703 = vld [vmem:[#allocation8 + $0x160] sm:$0xff]
        %v704 = vld [vmem:[#allocation8 + $0x168] sm:$0xff]
        %v705 = vld [vmem:[#allocation8 + $0x170] sm:$0xff]
        %v706 = vld [vmem:[#allocation8 + $0x178] sm:$0xff]
        %v707 = vld [vmem:[#allocation8 + $0x180] sm:$0xff]
        %v708 = vld [vmem:[#allocation8 + $0x188] sm:$0xff]
        %v709 = vld [vmem:[#allocation8 + $0x190] sm:$0xff]
        %v710 = vld [vmem:[#allocation8 + $0x198] sm:$0xff]
        %v711 = vld [vmem:[#allocation8 + $0x1a0] sm:$0xff]
        %v712 = vld [vmem:[#allocation8 + $0x1a8] sm:$0xff]
        %v713 = vld [vmem:[#allocation8 + $0x1b0] sm:$0xff]
        %v714 = vld [vmem:[#allocation8 + $0x1b8] sm:$0xff]
        %v715 = vld [vmem:[#allocation8 + $0x1c0] sm:$0xff]
        %v716 = vld [vmem:[#allocation8 + $0x1c8] sm:$0xff]
        %v717 = vld [vmem:[#allocation8 + $0x1d0] sm:$0xff]
        %v718 = vld [vmem:[#allocation8 + $0x1d8] sm:$0xff]
        %v719 = vld [vmem:[#allocation8 + $0x1e0] sm:$0xff]
        %v720 = vld [vmem:[#allocation8 + $0x1e8] sm:$0xff]
        %v721 = vld [vmem:[#allocation8 + $0x1f0] sm:$0xff]
        %v722 = vld [vmem:[#allocation8 + $0x1f8] sm:$0xff]
        %723 = vmatpush.msra.mxu0 %v674
        %724 = vmatpush.msra.mxu0 %v673
        %725 = vmatpush.msra.mxu0 %v672
        %726 = vmatpush.msra.mxu0 %v671
        %727 = vmatpush.msra.mxu0 %v670
        %728 = vmatpush.msra.mxu0 %v669
        %729 = vmatpush.msra.mxu0 %v668
        %730 = vmatpush.msra.mxu0 %v667
        %731 = vmatpush.msra.mxu0 %v666
        %732 = vmatpush.msra.mxu0 %v665
        %733 = vmatpush.msra.mxu0 %v664
        %734 = vmatpush.msra.mxu0 %v663
        %735 = vmatpush.msra.mxu0 %v662
        %736 = vmatpush.msra.mxu0 %v661
        %737 = vmatpush.msra.mxu0 %v660
        %738 = vmatpush.msra.mxu0 %v659
        %739 = vmatmul.f32.gmra.mxu0 %v651
        %v740 = vpop.f32.mrf.mxu0
        %v741 = vadd.f32 0.0, %v740
        %742 = vmatmul.f32.gmra.mxu0 %v655
        %v743 = vpop.f32.mrf.mxu0
        %v744 = vadd.f32 0.0, %v743
        %745 = vdwg.mxu0
        %746 = vmatpush.msra.mxu0 %v690
        %747 = vmatpush.msra.mxu0 %v689
        %748 = vmatpush.msra.mxu0 %v688
        %749 = vmatpush.msra.mxu0 %v687
        %750 = vmatpush.msra.mxu0 %v686
        %751 = vmatpush.msra.mxu0 %v685
        %752 = vmatpush.msra.mxu0 %v684
        %753 = vmatpush.msra.mxu0 %v683
        %754 = vmatpush.msra.mxu0 %v682
        %755 = vmatpush.msra.mxu0 %v681
        %756 = vmatpush.msra.mxu0 %v680
        %757 = vmatpush.msra.mxu0 %v679
        %758 = vmatpush.msra.mxu0 %v678
        %759 = vmatpush.msra.mxu0 %v677
        %760 = vmatpush.msra.mxu0 %v676
        %761 = vmatpush.msra.mxu0 %v675
        %762 = vmatmul.f32.gmra.mxu0 %v652
        %v763 = vpop.f32.mrf.mxu0
        %v764 = vadd.f32 %v741, %v763
        %765 = vmatmul.f32.gmra.mxu0 %v656
        %v766 = vpop.f32.mrf.mxu0
        %v767 = vadd.f32 %v744, %v766
        %768 = vdwg.mxu0
        %769 = vmatpush.msra.mxu0 %v706
        %770 = vmatpush.msra.mxu0 %v705
        %771 = vmatpush.msra.mxu0 %v704
        %772 = vmatpush.msra.mxu0 %v703
        %773 = vmatpush.msra.mxu0 %v702
        %774 = vmatpush.msra.mxu0 %v701
        %775 = vmatpush.msra.mxu0 %v700
        %776 = vmatpush.msra.mxu0 %v699
        %777 = vmatpush.msra.mxu0 %v698
        %778 = vmatpush.msra.mxu0 %v697
        %779 = vmatpush.msra.mxu0 %v696
        %780 = vmatpush.msra.mxu0 %v695
        %781 = vmatpush.msra.mxu0 %v694
        %782 = vmatpush.msra.mxu0 %v693
        %783 = vmatpush.msra.mxu0 %v692
        %784 = vmatpush.msra.mxu0 %v691
        %785 = vmatmul.f32.gmra.mxu0 %v653
        %v786 = vpop.f32.mrf.mxu0
        %v787 = vadd.f32 %v764, %v786
        %788 = vmatmul.f32.gmra.mxu0 %v657
        %v789 = vpop.f32.mrf.mxu0
        %v790 = vadd.f32 %v767, %v789
        %791 = vdwg.mxu0
        %792 = vmatpush.msra.mxu0 %v722
        %793 = vmatpush.msra.mxu0 %v721
        %794 = vmatpush.msra.mxu0 %v720
        %795 = vmatpush.msra.mxu0 %v719
        %796 = vmatpush.msra.mxu0 %v718
        %797 = vmatpush.msra.mxu0 %v717
        %798 = vmatpush.msra.mxu0 %v716
        %799 = vmatpush.msra.mxu0 %v715
        %800 = vmatpush.msra.mxu0 %v714
        %801 = vmatpush.msra.mxu0 %v713
        %802 = vmatpush.msra.mxu0 %v712
        %803 = vmatpush.msra.mxu0 %v711
        %804 = vmatpush.msra.mxu0 %v710
        %805 = vmatpush.msra.mxu0 %v709
        %806 = vmatpush.msra.mxu0 %v708
        %807 = vmatpush.msra.mxu0 %v707
        %808 = vmatmul.f32.gmra.mxu0 %v654
        %v809 = vpop.f32.mrf.mxu0
        %v810 = vadd.f32 %v787, %v809
        %811 = vmatmul.f32.gmra.mxu0 %v658
        %v812 = vpop.f32.mrf.mxu0
        %v813 = vadd.f32 %v790, %v812
        %814 = vdwg.mxu0
        %815 = vst [vmem:[%s265] sm:$0xff] %v810
        %816 = vst [vmem:[%s265 + $0x8] sm:$0xff] %v813
        %s817 = sand.u32 %s120, 1
        %s818 = scalar_lea.sflag [#allocation5], %s817
        %s819 = sand.u32 %s120, 1
        %s820 = smul.addr %s819, 16
        %s821 = scalar_lea.vmem [#allocation11], %s820
        // Predicated region
        $region53: #{tpu_custom_call.1} parent=35 // pred_check
          %p822 = pneg %p130
        $region54: #{tpu_custom_call.1} parent=35 // pred_check_branch
          %824 = sbr.rel (%p822) target = $region56
        $region55: #{tpu_custom_call.1} parent=35 // pred_region
          %s825 = smul.u32 2, %s23
          %827 = vsyncadd %s818, 0
          %s828 = smul.addr %s825, 8
          %s829 = scalar_lea.hbm %s4, %s828
          %s830 = sshll.u32 %s821, 4
          %s831 = int_to_ptr.vmem [resolvable:$true] %s830
          %s832 = sshll.u32 %s829, 4
          %s833 = int_to_ptr.hbm [resolvable:$true] %s832
          %838 = dma.vmem_to_hbm [thread:$0]  %s831, 256, %s833, %s818, 128, 128, 8
        $region56: #{tpu_custom_call.1} parent=35 // pred_fallthru
          _
      $region36: #{tpu_custom_call.1} parent=5 // pred_fallthru
        _
      %p839 = scmp.le.s32.totalorder 2, %s18
      // Predicated region
      $region57: #{tpu_custom_call.1} parent=5 // pred_check
        %p840 = pneg %p839
      $region58: #{tpu_custom_call.1} parent=5 // pred_check_branch
        %842 = sbr.rel (%p840) target = $region60
      $region59: #{tpu_custom_call.1} parent=5 // pred_region
        %s843 = ssub.s32 %s18, 2
        // Predicated region
        $region61: #{tpu_custom_call.1} parent=59 // pred_check
          %p844 = pneg %p136
        $region62: #{tpu_custom_call.1} parent=59 // pred_check_branch
          %846 = sbr.rel (%p844) target = $region64
        $region63: #{tpu_custom_call.1} parent=59 // pred_region
          %s847 = sand.u32 %s121, 1
          %s848 = scalar_lea.sflag [#allocation5], %s847
          %s849 = sand.u32 %s121, 1
          %s850 = smul.addr %s849, 16
          %s851 = scalar_lea.vmem [#allocation11], %s850
          %853 = dma.done %s848, 256
        $region64: #{tpu_custom_call.1} parent=59 // pred_fallthru
          _
      $region60: #{tpu_custom_call.1} parent=5 // pred_fallthru
        _
    $region6: #{tpu_custom_call.1} parent=1 // loop_footer
      %s22 = sadd.s32 1, %s18
    $region7: #{tpu_custom_call.1} parent=1 // loop_footer_branch
      %17 = sbr.rel target = $region3
    $region8: #{tpu_custom_call.1} parent=1 // loop_exit
      _
    %854 = vsyncpa [#allocation4], 1
    %s855 = scalar_lea.sflag [#allocation4], 1
    %856 = vsyncpa %s855, 1
    %857 = vsyncpa [#allocation7], 1
    %858 = vsyncpa [#allocation10], 1
    %859 = vsyncpa [#allocation5], 1
    %s860 = scalar_lea.sflag [#allocation5], 1
    %861 = vsyncpa %s860, 1

</llo_original>
